<compile_context>
chip_gen: v7x
topology: tpu7x:2x2x1
jax: 0.10.0
libtpu: 0.0.40
codegen_flags: <defaults>
</compile_context>

<pallas_src>
import functools

import jax
import jax.numpy as jnp
from jax import lax
from jax.experimental import pallas as pl
from jax.experimental.pallas import tpu as pltpu

NEG_SLOPE = 0.2
BN_EPS = 1e-5
BIG_NEG = -1e30


def _round_up(x, m):
    return ((x + m - 1) // m) * m


def _vmem_limit_bytes():
    try:
        cap = pltpu.get_tpu_info().vmem_capacity_bytes
    except Exception:
        cap = 64 * 1024 * 1024
    # ~96 MiB on 128-MiB parts (v5e/v6e), ~48 MiB on v7x (64 MiB physical).
    return min(int(cap * 3 // 4), 100 * 1024 * 1024)


_VMEM_LIMIT = _vmem_limit_bytes()


def _pick_tile(n):
    """dst/src tile size (lane dim must be a 128-multiple); pad N up to a multiple."""
    cap = 512 if _VMEM_LIMIT >= 80 * 1024 * 1024 else 256   # bigger tiles on v5e/v6e
    tile = min(cap, _round_up(n, 128))
    n_pad = _round_up(n, tile)
    return tile, n_pad


# ----------------------------------------------------------------------------
# Kernel 1 (row-tiled): folded-BN + ReLU + SharedDropout mask, then ONE fused
# MXU matmul producing [feat | res | el | er].  feat is stored bf16 so the
# attention kernel's aggregation matmul gets bf16-native MXU operands.
# ----------------------------------------------------------------------------
def _prep_kernel(x_ref, mask_ref, scale_ref, shift_ref, wbig_ref,
                 feat_ref, res_ref, sc_ref, *, hd_feats):
    h = jnp.maximum(x_ref[...] * scale_ref[...] + shift_ref[...], 0.0) * mask_ref[...]
    big = jnp.dot(h, wbig_ref[...], preferred_element_type=jnp.float32)
    feat_ref[...] = big[:, :hd_feats].astype(feat_ref.dtype)        # bf16
    res_ref[...] = big[:, hd_feats:2 * hd_feats]                    # f32 residual
    sc_ref[...] = big[:, 2 * hd_feats:]                             # [el | er] scores


# ----------------------------------------------------------------------------
# Kernel 2: attention + aggregation, 2-D tiled (dst tiles x src tiles) with a
# running (acc, denom) accumulator in VMEM scratch (deferred normalization).
# ----------------------------------------------------------------------------
def _gat_attn_kernel(feat_ref, el_ref, ert_ref, m_ref, adj_ref, res_ref, out_ref,
                     acc_ref, den_ref, *, n_heads, out_feats):
    si = pl.program_id(1)                      # src-tile index (reduction axis, innermost)

    @pl.when(si == 0)
    def _init():
        acc_ref[...] = jnp.zeros_like(acc_ref)
        den_ref[...] = jnp.zeros_like(den_ref)

    edge_mask = adj_ref[...] > 0               # int8 adjacency -> bool, hoisted over heads
    feat = feat_ref[...]                       # (S, H*D) bf16 (src rows)
    el = el_ref[...]                           # (S, H)  f32   (src scores)
    ert = ert_ref[...]                         # (H, T)  f32   (dst scores, lane-dense)
    m = m_ref[...]                             # (H, T)  f32   analytic softmax-max bound

    # Static unroll over heads (H is small).
    # TODO(synk): on v6e/v7x the e/p elementwise chain could also run in bf16.
    for hd in range(n_heads):
        # e[u, v] = leaky_relu(el[u] + er[v]) for edges; non-edges -> BIG_NEG.
        e = el[:, hd:hd + 1] + ert[hd:hd + 1, :]
        e = jnp.where(edge_mask, jnp.where(e > 0, e, NEG_SLOPE * e), BIG_NEG)
        # Deferred-normalization weights; exp(BIG_NEG - m) underflows to exactly 0,
        # so no `* adj` multiply is needed.
        p = jnp.exp(e - m[hd:hd + 1, :])                                   # (S, T) f32
        den_ref[hd:hd + 1, :] += jnp.sum(p, axis=0, keepdims=True)         # XLU reduce
        d0 = hd * out_feats
        # Aggregate by contracting the src axis on the MXU with bf16 operands,
        # f32 accumulation (dominant matmul).
        acc_ref[hd] += lax.dot_general(
            p.astype(jnp.bfloat16), feat[:, d0:d0 + out_feats],
            (((0,), (0,)), ((), ())), preferred_element_type=jnp.float32)  # (T, D)

    @pl.when(si == pl.num_programs(1) - 1)
    def _fin():
        # One tiny (H, T) -> (T, H) transpose per dst tile; EUP reciprocal.
        inv = pl.reciprocal(jnp.maximum(jnp.transpose(den_ref[...]), 1e-30),
                            approx=True)                                   # (T, H)
        res = res_ref[...]
        for hd in range(n_heads):
            d0 = hd * out_feats
            out_ref[:, d0:d0 + out_feats] = (acc_ref[hd] * inv[:, hd:hd + 1]
                                             + res[:, d0:d0 + out_feats])


# ----------------------------------------------------------------------------
# Wrapper
# ----------------------------------------------------------------------------
def _pack_attn(attn_l, attn_r):
    """Block-diagonal (H*D, 2H): feat @ pack -> [el | er] for all heads at once."""
    n_heads, d = attn_l.shape
    pack = jnp.zeros((n_heads * d, 2 * n_heads), jnp.float32)
    for hd in range(n_heads):
        pack = pack.at[hd * d:(hd + 1) * d, hd].set(attn_l[hd])
        pack = pack.at[hd * d:(hd + 1) * d, n_heads + hd].set(attn_r[hd])
    return pack


def revgat_block(x, dropout_mask, gamma, beta, w_fc, attn_l, attn_r, adj, w_res,
                 *, n_heads, out_feats):
    n, c = x.shape
    hd_feats = n_heads * out_feats

    # BN batch statistics folded to per-channel scale/shift (tiny, done in XLA so the
    # prep kernel can be row-tiled without a separate stats pass).
    mean = jnp.mean(x, axis=0, keepdims=True)
    var = jnp.mean((x - mean) ** 2, axis=0, keepdims=True)
    scale = (gamma * lax.rsqrt(var + BN_EPS)).astype(jnp.float32)
    shift = (beta - mean * scale).astype(jnp.float32)

    # Fused weight pack: h @ W_big -> [feat | res | el | er] in ONE MXU matmul.
    attn_pack = _pack_attn(attn_l, attn_r)                                # (H*D, 2H)
    w_big = jnp.concatenate([w_fc, w_res, w_fc @ attn_pack], axis=1).astype(jnp.float32)

    tile, n_pad = _pick_tile(n)
    pad = n_pad - n
    x_p = jnp.pad(x, ((0, pad), (0, 0)))
    mask_p = jnp.pad(dropout_mask, ((0, pad), (0, 0)))
    # TODO(synk): in production the adjacency should be materialized as int8 upstream;
    # the pad+cast here is a one-off XLA pass.
    adj_i8 = (jnp.pad(adj, ((0, pad), (0, pad))) > 0).astype(jnp.int8)

    n_tiles = n_pad // tile

    # --- kernel 1: row-tiled prep ---
    prep = functools.partial(_prep_kernel, hd_feats=hd_feats)
    feat, res, scores = pl.pallas_call(
        prep,
        out_shape=(jax.ShapeDtypeStruct((n_pad, hd_feats), jnp.bfloat16),
                   jax.ShapeDtypeStruct((n_pad, hd_feats), jnp.float32),
                   jax.ShapeDtypeStruct((n_pad, 2 * n_heads), jnp.float32)),
        grid_spec=pltpu.PrefetchScalarGridSpec(
            num_scalar_prefetch=0,
            grid=(n_tiles,),
            in_specs=[
                pl.BlockSpec((tile, c), lambda i: (i, 0)),                      # x
                pl.BlockSpec((tile, c), lambda i: (i, 0)),                      # mask
                pl.BlockSpec((1, c), lambda i: (0, 0)),                         # scale
                pl.BlockSpec((1, c), lambda i: (0, 0)),                         # shift
                pl.BlockSpec((c, 2 * hd_feats + 2 * n_heads), lambda i: (0, 0)),  # W_big
            ],
            out_specs=(pl.BlockSpec((tile, hd_feats), lambda i: (i, 0)),
                       pl.BlockSpec((tile, hd_feats), lambda i: (i, 0)),
                       pl.BlockSpec((tile, 2 * n_heads), lambda i: (i, 0))),
        ),
        compiler_params=pltpu.CompilerParams(
            dimension_semantics=("parallel",), vmem_limit_bytes=_VMEM_LIMIT),
    )(x_p, mask_p, scale, shift, w_big)

    # Tiny (H, N) side arrays in XLA: transposed dst scores and the analytic
    # softmax-max bound m[h, v] = leaky_relu(max_u el[u, h] + er[v, h]).
    el = scores[:, :n_heads]                       # (N_pad, H)
    er_t = jnp.transpose(scores[:, n_heads:])      # (H, N_pad), lane-dense for the kernel
    s = jnp.max(el, axis=0)[:, None] + er_t
    m = jnp.where(s > 0, s, NEG_SLOPE * s).astype(jnp.float32)

    # --- kernel 2: 2-D tiled attention + aggregation ---
    attn = functools.partial(_gat_attn_kernel, n_heads=n_heads, out_feats=out_feats)
    out = pl.pallas_call(
        attn,
        out_shape=jax.ShapeDtypeStruct((n_pad, hd_feats), jnp.float32),
        grid_spec=pltpu.PrefetchScalarGridSpec(
            num_scalar_prefetch=0,
            grid=(n_tiles, n_tiles),     # (dst tiles, src tiles); src is the reduction axis
            in_specs=[
                pl.BlockSpec((tile, hd_feats), lambda j, i: (i, 0)),   # feat (src rows, bf16)
                pl.BlockSpec((tile, n_heads), lambda j, i: (i, 0)),    # el   (src rows)
                pl.BlockSpec((n_heads, tile), lambda j, i: (0, j)),    # er^T (dst cols)
                pl.BlockSpec((n_heads, tile), lambda j, i: (0, j)),    # m    (dst cols)
                pl.BlockSpec((tile, tile), lambda j, i: (i, j)),       # adj  (src, dst) int8
                pl.BlockSpec((tile, hd_feats), lambda j, i: (j, 0)),   # res  (dst rows)
            ],
            out_specs=pl.BlockSpec((tile, hd_feats), lambda j, i: (j, 0)),
            scratch_shapes=[pltpu.VMEM((n_heads, tile, out_feats), jnp.float32),  # acc
                            pltpu.VMEM((n_heads, tile), jnp.float32)],            # denom
        ),
        compiler_params=pltpu.CompilerParams(
            # TODO(synk): confirm with xprof that the dst axis shards across both
            # TensorCores on v7x; switch to pltpu.CORE_PARALLEL if it does not.
            dimension_semantics=("parallel", "arbitrary"),
            vmem_limit_bytes=_VMEM_LIMIT),
    )(feat, el, er_t, m, adj_i8, res)

    return out[:n]                                  # strip row padding


# ----------------------------------------------------------------------------
# Edge encoder (Linear + bias + ReLU).  The RevGATBlock forward computes it but
# its result never reaches the block output, so the production path does NOT
# launch it (dead kernel).  Kept here for completeness.
# ----------------------------------------------------------------------------
def _edge_encoder_kernel(efeat_ref, w_ref, b_ref, out_ref):
    y = jnp.dot(efeat_ref[...], w_ref[...], preferred_element_type=jnp.float32)
    out_ref[...] = jnp.maximum(y + b_ref[...], 0.0)


def edge_encoder(efeat, w_e, b_e):
    e = efeat.shape[0]
    emb = w_e.shape[1]
    return pl.pallas_call(
        _edge_encoder_kernel,
        out_shape=jax.ShapeDtypeStruct((e, emb), jnp.float32),
        in_specs=[pl.BlockSpec(memory_space=pltpu.MemorySpace.VMEM)] * 3,
        out_specs=pl.BlockSpec(memory_space=pltpu.MemorySpace.VMEM),
    )(efeat, w_e, b_e)


# ----------------------------------------------------------------------------
# Pure-JAX f32 reference (correctness check of the Pallas kernels)
# ----------------------------------------------------------------------------
def _reference(x, mask, gamma, beta, w_fc, attn_l, attn_r, adj, w_res, H, D):
    mean = x.mean(0, keepdims=True)
    var = ((x - mean) ** 2).mean(0, keepdims=True)
    h = (x - mean) / jnp.sqrt(var + BN_EPS) * gamma + beta
    h = jnp.maximum(h, 0.0) * mask
    feat = h @ w_fc
    outs = []
    for hd in range(H):
        f = feat[:, hd * D:(hd + 1) * D]
        el = (f * attn_l[hd]).sum(1, keepdims=True)
        er = (f * attn_r[hd]).sum(1, keepdims=True)
        e = el + er.T
        e = jnp.where(e > 0, e, NEG_SLOPE * e)
        e = jnp.where(adj > 0, e, BIG_NEG)
        p = jnp.exp(e - e.max(0, keepdims=True)) * adj
        a = p / jnp.maximum(p.sum(0, keepdims=True), 1e-30)
        outs.append(a.T @ f)
    return jnp.concatenate(outs, axis=1) + h @ w_res


if __name__ == "__main__":
    # Small shapes: node_feats must equal n_heads * out_feats (the BatchNorm1d
    # channel count), as in RevGAT reversible blocks.
    N, H, D = 64, 2, 16          # nodes, heads, out_feats  -> C = 32
    C = H * D

    key = jax.random.PRNGKey(0)
    ks = jax.random.split(key, 8)
    gain = jnp.sqrt(2.0)         # nn.init.calculate_gain('relu')

    def xavier(k, fan_in, fan_out, shape):
        std = gain * jnp.sqrt(2.0 / (fan_in + fan_out))
        return (std * jax.random.normal(k, shape)).astype(jnp.float32)

    x = jax.random.normal(ks[0], (N, C), jnp.float32)
    dropout_mask = jnp.ones((N, C), jnp.float32)          # SharedDropout mask (identity)

    gamma = (1.0 + 0.1 * jax.random.normal(ks[1], (1, C))).astype(jnp.float32)
    beta = (0.1 * jax.random.normal(ks[2], (1, C))).astype(jnp.float32)

    w_fc = xavier(ks[3], C, H * D, (C, H * D))            # fc.weight^T
    attn_l = xavier(ks[4], D, H, (H, D))                  # (1, H, D) squeezed
    attn_r = xavier(ks[5], D, H, (H, D))
    w_res = xavier(ks[6], C, H * D, (C, H * D))           # res_fc.weight^T

    # Dense adjacency with self-loops (allow_zero_in_degree=True, but keep >=1).
    adj = (jax.random.uniform(ks[7], (N, N)) < 0.2).astype(jnp.float32)
    adj = jnp.maximum(adj, jnp.eye(N, dtype=jnp.float32))

    # TODO(synk): DGL sparse message passing is emulated with a dense adjacency;
    # training-only edge_drop / perm path and dropout randomness are not represented
    # (edge_drop=0, feat/attn drop asserted 0 in the module); edge_encoder(efeat) is
    # computed-but-unused in the module forward so its launch is dropped.

    out = revgat_block(x, dropout_mask, gamma, beta, w_fc, attn_l, attn_r, adj,
                       w_res, n_heads=H, out_feats=D)
    jax.block_until_ready(out)

    ref = _reference(x, dropout_mask, gamma, beta, w_fc, attn_l, attn_r, adj,
                     w_res, H, D)
    assert out.shape == (N, H * D)
    # bf16 MXU operands (feat + exp weights) trade bitwise parity for throughput;
    # tolerance reflects bf16 rounding (~1e-3 relative), reference stays f32.
    assert jnp.allclose(out, ref, atol=2e-2, rtol=2e-2), "mismatch vs reference"

    print("KERNEL_OK")
</pallas_src>

<mosaic_0001>
module attributes {stable_mosaic.version = 11 : i64} {
  func.func @_prep_kernel(%arg0: i32, %arg1: memref<128x32xf32, #tpu.memory_space<vmem>>, %arg2: memref<128x32xf32, #tpu.memory_space<vmem>>, %arg3: memref<1x32xf32, #tpu.memory_space<vmem>>, %arg4: memref<1x32xf32, #tpu.memory_space<vmem>>, %arg5: memref<32x68xf32, #tpu.memory_space<vmem>>, %arg6: memref<128x32xbf16, #tpu.memory_space<vmem>>, %arg7: memref<128x32xf32, #tpu.memory_space<vmem>>, %arg8: memref<128x4xf32, #tpu.memory_space<vmem>>) attributes {dimension_semantics = [#tpu.dimension_semantics<parallel>], iteration_bounds = array<i64: 1>, scalar_prefetch = 0 : i64, scratch_operands = 0 : i64, tpu.core_type = #tpu.core_type<tc>, window_params = [{transform_indices = @transform_0, window_bounds = array<i64: 128, 32>}, {transform_indices = @transform_1, window_bounds = array<i64: 128, 32>}, {pipeline_mode = #tpu.pipeline_mode<synchronous>, transform_indices = @transform_2, window_bounds = array<i64: 1, 32>}, {pipeline_mode = #tpu.pipeline_mode<synchronous>, transform_indices = @transform_3, window_bounds = array<i64: 1, 32>}, {pipeline_mode = #tpu.pipeline_mode<synchronous>, transform_indices = @transform_4, window_bounds = array<i64: 32, 68>}, {transform_indices = @transform_5, window_bounds = array<i64: 128, 32>}, {transform_indices = @transform_6, window_bounds = array<i64: 128, 32>}, {transform_indices = @transform_7, window_bounds = array<i64: 128, 4>}]} {
    %c0 = arith.constant 0 : index
    %c0_0 = arith.constant 0 : index
    %0 = vector.load %arg1[%c0, %c0_0] : memref<128x32xf32, #tpu.memory_space<vmem>>, vector<128x32xf32>
    %c0_1 = arith.constant 0 : index
    %c0_2 = arith.constant 0 : index
    %1 = vector.load %arg3[%c0_1, %c0_2] : memref<1x32xf32, #tpu.memory_space<vmem>>, vector<1x32xf32>
    %2 = vector.broadcast %1 : vector<1x32xf32> to vector<128x32xf32>
    %3 = arith.mulf %0, %2 : vector<128x32xf32>
    %c0_3 = arith.constant 0 : index
    %c0_4 = arith.constant 0 : index
    %4 = vector.load %arg4[%c0_3, %c0_4] : memref<1x32xf32, #tpu.memory_space<vmem>>, vector<1x32xf32>
    %5 = vector.broadcast %4 : vector<1x32xf32> to vector<128x32xf32>
    %6 = arith.addf %3, %5 : vector<128x32xf32>
    %cst = arith.constant 0.000000e+00 : f32
    %7 = vector.broadcast %cst : f32 to vector<128x32xf32>
    %8 = arith.maximumf %6, %7 : vector<128x32xf32>
    %c0_5 = arith.constant 0 : index
    %c0_6 = arith.constant 0 : index
    %9 = vector.load %arg2[%c0_5, %c0_6] : memref<128x32xf32, #tpu.memory_space<vmem>>, vector<128x32xf32>
    %10 = arith.mulf %8, %9 : vector<128x32xf32>
    %c0_7 = arith.constant 0 : index
    %c0_8 = arith.constant 0 : index
    %11 = vector.load %arg5[%c0_7, %c0_8] : memref<32x68xf32, #tpu.memory_space<vmem>>, vector<32x68xf32>
    %cst_9 = arith.constant dense<0.000000e+00> : vector<128x68xf32>
    %12 = tpu.matmul %10, %11, %cst_9 {dimension_numbers = #tpu.dot_dimension_numbers<[1], [0], [0], [1], [0, 0, 1, 1], [], []>} : vector<128x32xf32>, vector<32x68xf32>, vector<128x68xf32> -> vector<128x68xf32>
    %13 = vector.extract_strided_slice %12 {offsets = [0, 0], sizes = [128, 32], strides = [1, 1]} : vector<128x68xf32> to vector<128x32xf32>
    %14 = arith.truncf %13 : vector<128x32xf32> to vector<128x32xbf16>
    %c0_10 = arith.constant 0 : index
    %c0_11 = arith.constant 0 : index
    %15 = vector.load %arg6[%c0_10, %c0_11] : memref<128x32xbf16, #tpu.memory_space<vmem>>, vector<128x32xbf16>
    tpu.vector_store %arg6[%c0_10, %c0_11], %14 {strides = array<i32>} : memref<128x32xbf16, #tpu.memory_space<vmem>>, vector<128x32xbf16>,
    %16 = vector.extract_strided_slice %12 {offsets = [0, 32], sizes = [128, 32], strides = [1, 1]} : vector<128x68xf32> to vector<128x32xf32>
    %c0_12 = arith.constant 0 : index
    %c0_13 = arith.constant 0 : index
    %17 = vector.load %arg7[%c0_12, %c0_13] : memref<128x32xf32, #tpu.memory_space<vmem>>, vector<128x32xf32>
    tpu.vector_store %arg7[%c0_12, %c0_13], %16 {strides = array<i32>} : memref<128x32xf32, #tpu.memory_space<vmem>>, vector<128x32xf32>,
    %18 = vector.extract_strided_slice %12 {offsets = [0, 64], sizes = [128, 4], strides = [1, 1]} : vector<128x68xf32> to vector<128x4xf32>
    %c0_14 = arith.constant 0 : index
    %c0_15 = arith.constant 0 : index
    %19 = vector.load %arg8[%c0_14, %c0_15] : memref<128x4xf32, #tpu.memory_space<vmem>>, vector<128x4xf32>
    tpu.vector_store %arg8[%c0_14, %c0_15], %18 {strides = array<i32>} : memref<128x4xf32, #tpu.memory_space<vmem>>, vector<128x4xf32>,
    return
  }
  func.func @transform_0(%arg0: i32) -> (i32, i32) {
    %c0_i32 = arith.constant 0 : i32
    %c0_i32_0 = arith.constant 0 : i32
    return %arg0, %c0_i32 : i32, i32
  }
  func.func @transform_1(%arg0: i32) -> (i32, i32) {
    %c0_i32 = arith.constant 0 : i32
    %c0_i32_0 = arith.constant 0 : i32
    return %arg0, %c0_i32 : i32, i32
  }
  func.func @transform_2(%arg0: i32) -> (i32, i32) {
    %c0_i32 = arith.constant 0 : i32
    %c0_i32_0 = arith.constant 0 : i32
    %c0_i32_1 = arith.constant 0 : i32
    return %c0_i32, %c0_i32_0 : i32, i32
  }
  func.func @transform_3(%arg0: i32) -> (i32, i32) {
    %c0_i32 = arith.constant 0 : i32
    %c0_i32_0 = arith.constant 0 : i32
    %c0_i32_1 = arith.constant 0 : i32
    return %c0_i32, %c0_i32_0 : i32, i32
  }
  func.func @transform_4(%arg0: i32) -> (i32, i32) {
    %c0_i32 = arith.constant 0 : i32
    %c0_i32_0 = arith.constant 0 : i32
    %c0_i32_1 = arith.constant 0 : i32
    return %c0_i32, %c0_i32_0 : i32, i32
  }
  func.func @transform_5(%arg0: i32) -> (i32, i32) {
    %c0_i32 = arith.constant 0 : i32
    %c0_i32_0 = arith.constant 0 : i32
    return %arg0, %c0_i32 : i32, i32
  }
  func.func @transform_6(%arg0: i32) -> (i32, i32) {
    %c0_i32 = arith.constant 0 : i32
    %c0_i32_0 = arith.constant 0 : i32
    return %arg0, %c0_i32 : i32, i32
  }
  func.func @transform_7(%arg0: i32) -> (i32, i32) {
    %c0_i32 = arith.constant 0 : i32
    %c0_i32_0 = arith.constant 0 : i32
    return %arg0, %c0_i32 : i32, i32
  }
}

</mosaic_0001>

<llo_original>
// kernel: tpu_custom_call.1
$region0: #{tpu_custom_call.1}
  #allocation0 [shape = 'u32[]', space=smem, size = 0x4, offset = 0x4, fixed_abs, tag = 'smem constant byte address 0x4 - core index']
  #allocation1 [shape = 'u32[144,128]{1,0:T(1,128)}', space=vmem, size = 0x12000, scoped, tag = 'internal scratch']
  %s0 = inlined_call_operand.vmem [shape: f32[128,32], index: 0, kind: input, shape index: {}]
  %s1 = inlined_call_operand.vmem [shape: f32[128,32], index: 1, kind: input, shape index: {}]
  %s2 = inlined_call_operand.vmem [shape: f32[1,32], index: 2, kind: input, shape index: {}]
  %s3 = inlined_call_operand.vmem [shape: f32[1,32], index: 3, kind: input, shape index: {}]
  %s4 = inlined_call_operand.vmem [shape: f32[32,68], index: 4, kind: input, shape index: {}]
  %s5 = inlined_call_operand.vmem [shape: bf16[128,32], index: 5, kind: output, shape index: {0}]
  %s6 = inlined_call_operand.vmem [shape: f32[128,32], index: 6, kind: output, shape index: {1}]
  %s7 = inlined_call_operand.vmem [shape: f32[128,4], index: 7, kind: output, shape index: {2}]
  %8 = xla_tuple %s5, %s6, %s7
  %s9 = sld [smem:[#allocation0]]
  $region46: #{tpu_custom_call.1} parent=0
    _
  %s11 = ssub.s32 1, %s9
  %s12 = scalar_select 0, %s11, %s9
  // Predicated region
  $region2: #{tpu_custom_call.1} parent=0 // pred_check
    _
  $region3: #{tpu_custom_call.1} parent=0 // pred_check_branch
    %14 = sbr.rel (0) target = $region5
  $region4: #{tpu_custom_call.1} parent=0 // pred_region
    _
  $region5: #{tpu_custom_call.1} parent=0 // pred_fallthru
    _
  // Predicated region
  $region6: #{tpu_custom_call.1} parent=0 // pred_check
    _
  $region7: #{tpu_custom_call.1} parent=0 // pred_check_branch
    %16 = sbr.rel (0) target = $region9
  $region8: #{tpu_custom_call.1} parent=0 // pred_region
    _
  $region9: #{tpu_custom_call.1} parent=0 // pred_fallthru
    _
  // Predicated region
  $region10: #{tpu_custom_call.1} parent=0 // pred_check
    _
  $region11: #{tpu_custom_call.1} parent=0 // pred_check_branch
    %18 = sbr.rel (0) target = $region13
  $region12: #{tpu_custom_call.1} parent=0 // pred_region
    _
  $region13: #{tpu_custom_call.1} parent=0 // pred_fallthru
    _
  // Predicated region
  $region14: #{tpu_custom_call.1} parent=0 // pred_check
    _
  $region15: #{tpu_custom_call.1} parent=0 // pred_check_branch
    %20 = sbr.rel (0) target = $region17
  $region16: #{tpu_custom_call.1} parent=0 // pred_region
    _
  $region17: #{tpu_custom_call.1} parent=0 // pred_fallthru
    _
  // Predicated region
  $region18: #{tpu_custom_call.1} parent=0 // pred_check
    _
  $region19: #{tpu_custom_call.1} parent=0 // pred_check_branch
    %22 = sbr.rel (0) target = $region21
  $region20: #{tpu_custom_call.1} parent=0 // pred_region
    _
  $region21: #{tpu_custom_call.1} parent=0 // pred_fallthru
    _
  %v23 = vld [vmem:[%s0] sm:$0xff]
  %v24 = vld [vmem:[%s0 + $0x8] sm:$0xff]
  %v25 = vld [vmem:[%s0 + $0x10] sm:$0xff]
  %v26 = vld [vmem:[%s0 + $0x18] sm:$0xff]
  %v27 = vld [vmem:[%s0 + $0x20] sm:$0xff]
  %v28 = vld [vmem:[%s0 + $0x28] sm:$0xff]
  %v29 = vld [vmem:[%s0 + $0x30] sm:$0xff]
  %v30 = vld [vmem:[%s0 + $0x38] sm:$0xff]
  %v31 = vld [vmem:[%s0 + $0x40] sm:$0xff]
  %v32 = vld [vmem:[%s0 + $0x48] sm:$0xff]
  %v33 = vld [vmem:[%s0 + $0x50] sm:$0xff]
  %v34 = vld [vmem:[%s0 + $0x58] sm:$0xff]
  %v35 = vld [vmem:[%s0 + $0x60] sm:$0xff]
  %v36 = vld [vmem:[%s0 + $0x68] sm:$0xff]
  %v37 = vld [vmem:[%s0 + $0x70] sm:$0xff]
  %v38 = vld [vmem:[%s0 + $0x78] sm:$0xff]
  %v39 = vld [vmem:[%s2] sm:$0x1]
  %v41 = vlaneseq
  %v42 = vshrl.u32 %v41, 7
  %v43 = vsub.s32 0, %v42
  %v44 = vrot.slane %v39, %v43
  %v46 = vmul.f32 %v23, %v44
  %v47 = vmul.f32 %v24, %v44
  %v48 = vmul.f32 %v25, %v44
  %v49 = vmul.f32 %v26, %v44
  %v50 = vmul.f32 %v27, %v44
  %v51 = vmul.f32 %v28, %v44
  %v52 = vmul.f32 %v29, %v44
  %v53 = vmul.f32 %v30, %v44
  %v54 = vmul.f32 %v31, %v44
  %v55 = vmul.f32 %v32, %v44
  %v56 = vmul.f32 %v33, %v44
  %v57 = vmul.f32 %v34, %v44
  %v58 = vmul.f32 %v35, %v44
  %v59 = vmul.f32 %v36, %v44
  %v60 = vmul.f32 %v37, %v44
  %v61 = vmul.f32 %v38, %v44
  %v62 = vld [vmem:[%s3] sm:$0x1]
  %v64 = vlaneseq
  %v65 = vshrl.u32 %v64, 7
  %v66 = vsub.s32 0, %v65
  %v67 = vrot.slane %v62, %v66
  %v69 = vadd.f32 %v46, %v67
  %v70 = vadd.f32 %v47, %v67
  %v71 = vadd.f32 %v48, %v67
  %v72 = vadd.f32 %v49, %v67
  %v73 = vadd.f32 %v50, %v67
  %v74 = vadd.f32 %v51, %v67
  %v75 = vadd.f32 %v52, %v67
  %v76 = vadd.f32 %v53, %v67
  %v77 = vadd.f32 %v54, %v67
  %v78 = vadd.f32 %v55, %v67
  %v79 = vadd.f32 %v56, %v67
  %v80 = vadd.f32 %v57, %v67
  %v81 = vadd.f32 %v58, %v67
  %v82 = vadd.f32 %v59, %v67
  %v83 = vadd.f32 %v60, %v67
  %v84 = vadd.f32 %v61, %v67
  %v85 = vmax.f32 %v69, 0.0
  %v86 = vmax.f32 %v70, 0.0
  %v87 = vmax.f32 %v71, 0.0
  %v88 = vmax.f32 %v72, 0.0
  %v89 = vmax.f32 %v73, 0.0
  %v90 = vmax.f32 %v74, 0.0
  %v91 = vmax.f32 %v75, 0.0
  %v92 = vmax.f32 %v76, 0.0
  %v93 = vmax.f32 %v77, 0.0
  %v94 = vmax.f32 %v78, 0.0
  %v95 = vmax.f32 %v79, 0.0
  %v96 = vmax.f32 %v80, 0.0
  %v97 = vmax.f32 %v81, 0.0
  %v98 = vmax.f32 %v82, 0.0
  %v99 = vmax.f32 %v83, 0.0
  %v100 = vmax.f32 %v84, 0.0
  %v101 = vld [vmem:[%s1] sm:$0xff]
  %v102 = vld [vmem:[%s1 + $0x8] sm:$0xff]
  %v103 = vld [vmem:[%s1 + $0x10] sm:$0xff]
  %v104 = vld [vmem:[%s1 + $0x18] sm:$0xff]
  %v105 = vld [vmem:[%s1 + $0x20] sm:$0xff]
  %v106 = vld [vmem:[%s1 + $0x28] sm:$0xff]
  %v107 = vld [vmem:[%s1 + $0x30] sm:$0xff]
  %v108 = vld [vmem:[%s1 + $0x38] sm:$0xff]
  %v109 = vld [vmem:[%s1 + $0x40] sm:$0xff]
  %v110 = vld [vmem:[%s1 + $0x48] sm:$0xff]
  %v111 = vld [vmem:[%s1 + $0x50] sm:$0xff]
  %v112 = vld [vmem:[%s1 + $0x58] sm:$0xff]
  %v113 = vld [vmem:[%s1 + $0x60] sm:$0xff]
  %v114 = vld [vmem:[%s1 + $0x68] sm:$0xff]
  %v115 = vld [vmem:[%s1 + $0x70] sm:$0xff]
  %v116 = vld [vmem:[%s1 + $0x78] sm:$0xff]
  %v117 = vmul.f32 %v85, %v101
  %v118 = vmul.f32 %v86, %v102
  %v119 = vmul.f32 %v87, %v103
  %v120 = vmul.f32 %v88, %v104
  %v121 = vmul.f32 %v89, %v105
  %v122 = vmul.f32 %v90, %v106
  %v123 = vmul.f32 %v91, %v107
  %v124 = vmul.f32 %v92, %v108
  %v125 = vmul.f32 %v93, %v109
  %v126 = vmul.f32 %v94, %v110
  %v127 = vmul.f32 %v95, %v111
  %v128 = vmul.f32 %v96, %v112
  %v129 = vmul.f32 %v97, %v113
  %v130 = vmul.f32 %v98, %v114
  %v131 = vmul.f32 %v99, %v115
  %v132 = vmul.f32 %v100, %v116
  %v133 = vld [vmem:[%s4] sm:$0xff]
  %v134 = vld [vmem:[%s4 + $0x8] sm:$0xff]
  %v135 = vld [vmem:[%s4 + $0x10] sm:$0xff]
  %v136 = vld [vmem:[%s4 + $0x18] sm:$0xff]
  %vm137 = vcmask 261120
  %v139 = vsel %vm137, %v117, 0
  %v142 = vsel %vm137, %v118, 0
  %v145 = vsel %vm137, %v119, 0
  %v148 = vsel %vm137, %v120, 0
  %v151 = vsel %vm137, %v121, 0
  %v154 = vsel %vm137, %v122, 0
  %v157 = vsel %vm137, %v123, 0
  %v160 = vsel %vm137, %v124, 0
  %v163 = vsel %vm137, %v125, 0
  %v166 = vsel %vm137, %v126, 0
  %v169 = vsel %vm137, %v127, 0
  %v172 = vsel %vm137, %v128, 0
  %v175 = vsel %vm137, %v129, 0
  %v178 = vsel %vm137, %v130, 0
  %v181 = vsel %vm137, %v131, 0
  %v184 = vsel %vm137, %v132, 0
  %186 = vmatprep.subr.mxu0 0.0
  %187 = vmatpush1.msra.mxu0 %v133
  %188 = vmatprep.subr.mxu0 0.0
  %189 = vmatpush1.msra.mxu0 %v134
  %190 = vmatprep.subr.mxu0 0.0
  %191 = vmatpush1.msra.mxu0 %v135
  %192 = vmatprep.subr.mxu0 0.0
  %193 = vmatpush1.msra.mxu0 %v136
  %194 = vmatprep.subr.mxu0 0.0
  %195 = vmatpush1.msra.mxu0 0.0
  %196 = vmatprep.subr.mxu0 0.0
  %197 = vmatpush1.msra.mxu0 0.0
  %198 = vmatprep.subr.mxu0 0.0
  %199 = vmatpush1.msra.mxu0 0.0
  %200 = vmatprep.subr.mxu0 0.0
  %201 = vmatpush1.msra.mxu0 0.0
  %202 = vmatprep.subr.mxu0 0.0
  %203 = vmatpush1.msra.mxu0 0.0
  %204 = vmatprep.subr.mxu0 0.0
  %205 = vmatpush1.msra.mxu0 0.0
  %206 = vmatprep.subr.mxu0 0.0
  %207 = vmatpush1.msra.mxu0 0.0
  %208 = vmatprep.subr.mxu0 0.0
  %209 = vmatpush1.msra.mxu0 0.0
  %210 = vmatprep.subr.mxu0 0.0
  %211 = vmatpush1.msra.mxu0 0.0
  %212 = vmatprep.subr.mxu0 0.0
  %213 = vmatpush1.msra.mxu0 0.0
  %214 = vmatprep.subr.mxu0 0.0
  %215 = vmatpush1.msra.mxu0 0.0
  %216 = vmatprep.subr.mxu0 0.0
  %217 = vmatpush1.msra.mxu0 0.0
  %218 = vmatprep.subr.mxu0 0.0
  %219 = vmatpush1.msra.mxu0 0.0
  %220 = vmatprep.subr.mxu0 0.0
  %221 = vmatpush1.msra.mxu0 0.0
  %222 = vmatprep.subr.mxu0 0.0
  %223 = vmatpush1.msra.mxu0 0.0
  %224 = vmatprep.subr.mxu0 0.0
  %225 = vmatpush1.msra.mxu0 0.0
  %226 = vmatprep.subr.mxu0 0.0
  %227 = vmatpush1.msra.mxu0 0.0
  %228 = vmatprep.subr.mxu0 0.0
  %229 = vmatpush1.msra.mxu0 0.0
  %230 = vmatprep.subr.mxu0 0.0
  %231 = vmatpush1.msra.mxu0 0.0
  %232 = vmatprep.subr.mxu0 0.0
  %233 = vmatpush1.msra.mxu0 0.0
  %234 = vmatprep.subr.mxu0 0.0
  %235 = vmatpush1.msra.mxu0 0.0
  %236 = vmatprep.subr.mxu0 0.0
  %237 = vmatpush1.msra.mxu0 0.0
  %238 = vmatprep.subr.mxu0 0.0
  %239 = vmatpush1.msra.mxu0 0.0
  %240 = vmatprep.subr.mxu0 0.0
  %241 = vmatpush1.msra.mxu0 0.0
  %242 = vmatprep.subr.mxu0 0.0
  %243 = vmatpush1.msra.mxu0 0.0
  %244 = vmatprep.subr.mxu0 0.0
  %245 = vmatpush1.msra.mxu0 0.0
  %246 = vmatprep.subr.mxu0 0.0
  %247 = vmatpush1.msra.mxu0 0.0
  %248 = vmatprep.subr.mxu0 0.0
  %249 = vmatpush1.msra.mxu0 0.0
  %250 = vmatprep.mubr.f32.mxu0 0.0
  %251 = vmatmul.mubr.f32.gmra.mrb[0].mxu0 %v139
  %v252 = vpop.f32.mrb[0].mxu0
  %v253 = vadd.f32 0.0, %v252
  %v254 = vpop.f32.mrb[0].mxu0
  %255 = vmatprep.mubr.f32.mxu0 0.0
  %256 = vmatmul.mubr.f32.gmra.mrb[0].mxu0 %v142
  %v257 = vpop.f32.mrb[0].mxu0
  %v258 = vadd.f32 0.0, %v257
  %v259 = vpop.f32.mrb[0].mxu0
  %260 = vmatprep.mubr.f32.mxu0 0.0
  %261 = vmatmul.mubr.f32.gmra.mrb[0].mxu0 %v145
  %v262 = vpop.f32.mrb[0].mxu0
  %v263 = vadd.f32 0.0, %v262
  %v264 = vpop.f32.mrb[0].mxu0
  %265 = vmatprep.mubr.f32.mxu0 0.0
  %266 = vmatmul.mubr.f32.gmra.mrb[0].mxu0 %v148
  %v267 = vpop.f32.mrb[0].mxu0
  %v268 = vadd.f32 0.0, %v267
  %v269 = vpop.f32.mrb[0].mxu0
  %270 = vmatprep.mubr.f32.mxu0 0.0
  %271 = vmatmul.mubr.f32.gmra.mrb[0].mxu0 %v151
  %v272 = vpop.f32.mrb[0].mxu0
  %v273 = vadd.f32 0.0, %v272
  %v274 = vpop.f32.mrb[0].mxu0
  %275 = vmatprep.mubr.f32.mxu0 0.0
  %276 = vmatmul.mubr.f32.gmra.mrb[0].mxu0 %v154
  %v277 = vpop.f32.mrb[0].mxu0
  %v278 = vadd.f32 0.0, %v277
  %v279 = vpop.f32.mrb[0].mxu0
  %280 = vmatprep.mubr.f32.mxu0 0.0
  %281 = vmatmul.mubr.f32.gmra.mrb[0].mxu0 %v157
  %v282 = vpop.f32.mrb[0].mxu0
  %v283 = vadd.f32 0.0, %v282
  %v284 = vpop.f32.mrb[0].mxu0
  %285 = vmatprep.mubr.f32.mxu0 0.0
  %286 = vmatmul.mubr.f32.gmra.mrb[0].mxu0 %v160
  %v287 = vpop.f32.mrb[0].mxu0
  %v288 = vadd.f32 0.0, %v287
  %v289 = vpop.f32.mrb[0].mxu0
  %290 = vmatprep.mubr.f32.mxu0 0.0
  %291 = vmatmul.mubr.f32.gmra.mrb[0].mxu0 %v163
  %v292 = vpop.f32.mrb[0].mxu0
  %v293 = vadd.f32 0.0, %v292
  %v294 = vpop.f32.mrb[0].mxu0
  %295 = vmatprep.mubr.f32.mxu0 0.0
  %296 = vmatmul.mubr.f32.gmra.mrb[0].mxu0 %v166
  %v297 = vpop.f32.mrb[0].mxu0
  %v298 = vadd.f32 0.0, %v297
  %v299 = vpop.f32.mrb[0].mxu0
  %300 = vmatprep.mubr.f32.mxu0 0.0
  %301 = vmatmul.mubr.f32.gmra.mrb[0].mxu0 %v169
  %v302 = vpop.f32.mrb[0].mxu0
  %v303 = vadd.f32 0.0, %v302
  %v304 = vpop.f32.mrb[0].mxu0
  %305 = vmatprep.mubr.f32.mxu0 0.0
  %306 = vmatmul.mubr.f32.gmra.mrb[0].mxu0 %v172
  %v307 = vpop.f32.mrb[0].mxu0
  %v308 = vadd.f32 0.0, %v307
  %v309 = vpop.f32.mrb[0].mxu0
  %310 = vmatprep.mubr.f32.mxu0 0.0
  %311 = vmatmul.mubr.f32.gmra.mrb[0].mxu0 %v175
  %v312 = vpop.f32.mrb[0].mxu0
  %v313 = vadd.f32 0.0, %v312
  %v314 = vpop.f32.mrb[0].mxu0
  %315 = vmatprep.mubr.f32.mxu0 0.0
  %316 = vmatmul.mubr.f32.gmra.mrb[0].mxu0 %v178
  %v317 = vpop.f32.mrb[0].mxu0
  %v318 = vadd.f32 0.0, %v317
  %v319 = vpop.f32.mrb[0].mxu0
  %320 = vmatprep.mubr.f32.mxu0 0.0
  %321 = vmatmul.mubr.f32.gmra.mrb[0].mxu0 %v181
  %v322 = vpop.f32.mrb[0].mxu0
  %v323 = vadd.f32 0.0, %v322
  %v324 = vpop.f32.mrb[0].mxu0
  %325 = vmatprep.mubr.f32.mxu0 0.0
  %326 = vmatmul.mubr.f32.gmra.mrb[0].mxu0 %v184
  %v327 = vpop.f32.mrb[0].mxu0
  %v328 = vadd.f32 0.0, %v327
  %v329 = vpop.f32.mrb[0].mxu0
  %330 = vdwg.mxu0
  %v331 = vpack.c.bf16 %v258, %v253
  %v332 = vpack.c.bf16 %v268, %v263
  %v333 = vpack.c.bf16 %v278, %v273
  %v334 = vpack.c.bf16 %v288, %v283
  %v335 = vpack.c.bf16 %v298, %v293
  %v336 = vpack.c.bf16 %v308, %v303
  %v337 = vpack.c.bf16 %v318, %v313
  %v338 = vpack.c.bf16 %v328, %v323
  %v347 = vunpack.c.l.b16 %v331
  %v348 = vunpack.c.h.b16 %v331
  %v349 = vunpack.c.l.b16 %v332
  %v350 = vunpack.c.h.b16 %v332
  %v351 = vunpack.c.l.b16 %v333
  %v352 = vunpack.c.h.b16 %v333
  %v353 = vunpack.c.l.b16 %v334
  %v354 = vunpack.c.h.b16 %v334
  %v355 = vunpack.c.l.b16 %v335
  %v356 = vunpack.c.h.b16 %v335
  %v357 = vunpack.c.l.b16 %v336
  %v358 = vunpack.c.h.b16 %v336
  %v359 = vunpack.c.l.b16 %v337
  %v360 = vunpack.c.h.b16 %v337
  %v361 = vunpack.c.l.b16 %v338
  %v362 = vunpack.c.h.b16 %v338
  %v363 = vpack.c.b16 %v347, %v347
  %v364 = vpack.c.b16 %v348, %v348
  %v365 = vpack.c.b16 %v349, %v349
  %v366 = vpack.c.b16 %v350, %v350
  %v367 = vpack.c.b16 %v351, %v351
  %v368 = vpack.c.b16 %v352, %v352
  %v369 = vpack.c.b16 %v353, %v353
  %v370 = vpack.c.b16 %v354, %v354
  %v371 = vpack.c.b16 %v355, %v355
  %v372 = vpack.c.b16 %v356, %v356
  %v373 = vpack.c.b16 %v357, %v357
  %v374 = vpack.c.b16 %v358, %v358
  %v375 = vpack.c.b16 %v359, %v359
  %v376 = vpack.c.b16 %v360, %v360
  %v377 = vpack.c.b16 %v361, %v361
  %v378 = vpack.c.b16 %v362, %v362
  %vm395 = vcmask 257024
  %396 = vst.msk [vmem:[%s5] sm:$0xf] %vm395, %v363
  %397 = vst.msk [vmem:[%s5 + $0x4] sm:$0xf] %vm395, %v364
  %398 = vst.msk [vmem:[%s5 + $0x8] sm:$0xf] %vm395, %v365
  %399 = vst.msk [vmem:[%s5 + $0xc] sm:$0xf] %vm395, %v366
  %400 = vst.msk [vmem:[%s5 + $0x10] sm:$0xf] %vm395, %v367
  %401 = vst.msk [vmem:[%s5 + $0x14] sm:$0xf] %vm395, %v368
  %402 = vst.msk [vmem:[%s5 + $0x18] sm:$0xf] %vm395, %v369
  %403 = vst.msk [vmem:[%s5 + $0x1c] sm:$0xf] %vm395, %v370
  %404 = vst.msk [vmem:[%s5 + $0x20] sm:$0xf] %vm395, %v371
  %405 = vst.msk [vmem:[%s5 + $0x24] sm:$0xf] %vm395, %v372
  %406 = vst.msk [vmem:[%s5 + $0x28] sm:$0xf] %vm395, %v373
  %407 = vst.msk [vmem:[%s5 + $0x2c] sm:$0xf] %vm395, %v374
  %408 = vst.msk [vmem:[%s5 + $0x30] sm:$0xf] %vm395, %v375
  %409 = vst.msk [vmem:[%s5 + $0x34] sm:$0xf] %vm395, %v376
  %410 = vst.msk [vmem:[%s5 + $0x38] sm:$0xf] %vm395, %v377
  %411 = vst.msk [vmem:[%s5 + $0x3c] sm:$0xf] %vm395, %v378
  %428 = vrot.lane.b32.xlu0 %v253, 96
  %v429 = vpop.permute.xlu0 %428
  %430 = vrot.lane.b32.xlu0 %v258, 96
  %v431 = vpop.permute.xlu0 %430
  %432 = vrot.lane.b32.xlu0 %v263, 96
  %v433 = vpop.permute.xlu0 %432
  %434 = vrot.lane.b32.xlu0 %v268, 96
  %v435 = vpop.permute.xlu0 %434
  %436 = vrot.lane.b32.xlu0 %v273, 96
  %v437 = vpop.permute.xlu0 %436
  %438 = vrot.lane.b32.xlu0 %v278, 96
  %v439 = vpop.permute.xlu0 %438
  %440 = vrot.lane.b32.xlu0 %v283, 96
  %v441 = vpop.permute.xlu0 %440
  %442 = vrot.lane.b32.xlu0 %v288, 96
  %v443 = vpop.permute.xlu0 %442
  %444 = vrot.lane.b32.xlu0 %v293, 96
  %v445 = vpop.permute.xlu0 %444
  %446 = vrot.lane.b32.xlu0 %v298, 96
  %v447 = vpop.permute.xlu0 %446
  %448 = vrot.lane.b32.xlu0 %v303, 96
  %v449 = vpop.permute.xlu0 %448
  %450 = vrot.lane.b32.xlu0 %v308, 96
  %v451 = vpop.permute.xlu0 %450
  %452 = vrot.lane.b32.xlu0 %v313, 96
  %v453 = vpop.permute.xlu0 %452
  %454 = vrot.lane.b32.xlu0 %v318, 96
  %v455 = vpop.permute.xlu0 %454
  %456 = vrot.lane.b32.xlu0 %v323, 96
  %v457 = vpop.permute.xlu0 %456
  %458 = vrot.lane.b32.xlu0 %v328, 96
  %v459 = vpop.permute.xlu0 %458
  %476 = vst.msk [vmem:[%s6] sm:$0xff] %vm137, %v429
  %477 = vst.msk [vmem:[%s6 + $0x8] sm:$0xff] %vm137, %v431
  %478 = vst.msk [vmem:[%s6 + $0x10] sm:$0xff] %vm137, %v433
  %479 = vst.msk [vmem:[%s6 + $0x18] sm:$0xff] %vm137, %v435
  %480 = vst.msk [vmem:[%s6 + $0x20] sm:$0xff] %vm137, %v437
  %481 = vst.msk [vmem:[%s6 + $0x28] sm:$0xff] %vm137, %v439
  %482 = vst.msk [vmem:[%s6 + $0x30] sm:$0xff] %vm137, %v441
  %483 = vst.msk [vmem:[%s6 + $0x38] sm:$0xff] %vm137, %v443
  %484 = vst.msk [vmem:[%s6 + $0x40] sm:$0xff] %vm137, %v445
  %485 = vst.msk [vmem:[%s6 + $0x48] sm:$0xff] %vm137, %v447
  %486 = vst.msk [vmem:[%s6 + $0x50] sm:$0xff] %vm137, %v449
  %487 = vst.msk [vmem:[%s6 + $0x58] sm:$0xff] %vm137, %v451
  %488 = vst.msk [vmem:[%s6 + $0x60] sm:$0xff] %vm137, %v453
  %489 = vst.msk [vmem:[%s6 + $0x68] sm:$0xff] %vm137, %v455
  %490 = vst.msk [vmem:[%s6 + $0x70] sm:$0xff] %vm137, %v457
  %491 = vst.msk [vmem:[%s6 + $0x78] sm:$0xff] %vm137, %v459
  %492 = vrot.lane.b32.xlu0 %v253, 64
  %v493 = vpop.permute.xlu0 %492
  %494 = vrot.lane.b32.xlu0 %v258, 64
  %v495 = vpop.permute.xlu0 %494
  %496 = vrot.lane.b32.xlu0 %v263, 64
  %v497 = vpop.permute.xlu0 %496
  %498 = vrot.lane.b32.xlu0 %v268, 64
  %v499 = vpop.permute.xlu0 %498
  %500 = vrot.lane.b32.xlu0 %v273, 64
  %v501 = vpop.permute.xlu0 %500
  %502 = vrot.lane.b32.xlu0 %v278, 64
  %v503 = vpop.permute.xlu0 %502
  %504 = vrot.lane.b32.xlu0 %v283, 64
  %v505 = vpop.permute.xlu0 %504
  %506 = vrot.lane.b32.xlu0 %v288, 64
  %v507 = vpop.permute.xlu0 %506
  %508 = vrot.lane.b32.xlu0 %v293, 64
  %v509 = vpop.permute.xlu0 %508
  %510 = vrot.lane.b32.xlu0 %v298, 64
  %v511 = vpop.permute.xlu0 %510
  %512 = vrot.lane.b32.xlu0 %v303, 64
  %v513 = vpop.permute.xlu0 %512
  %514 = vrot.lane.b32.xlu0 %v308, 64
  %v515 = vpop.permute.xlu0 %514
  %516 = vrot.lane.b32.xlu0 %v313, 64
  %v517 = vpop.permute.xlu0 %516
  %518 = vrot.lane.b32.xlu0 %v318, 64
  %v519 = vpop.permute.xlu0 %518
  %520 = vrot.lane.b32.xlu0 %v323, 64
  %v521 = vpop.permute.xlu0 %520
  %522 = vrot.lane.b32.xlu0 %v328, 64
  %v523 = vpop.permute.xlu0 %522
  %vm540 = vcmask 31744
  %541 = vst.msk [vmem:[%s7] sm:$0xff] %vm540, %v493
  %542 = vst.msk [vmem:[%s7 + $0x8] sm:$0xff] %vm540, %v495
  %543 = vst.msk [vmem:[%s7 + $0x10] sm:$0xff] %vm540, %v497
  %544 = vst.msk [vmem:[%s7 + $0x18] sm:$0xff] %vm540, %v499
  %545 = vst.msk [vmem:[%s7 + $0x20] sm:$0xff] %vm540, %v501
  %546 = vst.msk [vmem:[%s7 + $0x28] sm:$0xff] %vm540, %v503
  %547 = vst.msk [vmem:[%s7 + $0x30] sm:$0xff] %vm540, %v505
  %548 = vst.msk [vmem:[%s7 + $0x38] sm:$0xff] %vm540, %v507
  %549 = vst.msk [vmem:[%s7 + $0x40] sm:$0xff] %vm540, %v509
  %550 = vst.msk [vmem:[%s7 + $0x48] sm:$0xff] %vm540, %v511
  %551 = vst.msk [vmem:[%s7 + $0x50] sm:$0xff] %vm540, %v513
  %552 = vst.msk [vmem:[%s7 + $0x58] sm:$0xff] %vm540, %v515
  %553 = vst.msk [vmem:[%s7 + $0x60] sm:$0xff] %vm540, %v517
  %554 = vst.msk [vmem:[%s7 + $0x68] sm:$0xff] %vm540, %v519
  %555 = vst.msk [vmem:[%s7 + $0x70] sm:$0xff] %vm540, %v521
  %556 = vst.msk [vmem:[%s7 + $0x78] sm:$0xff] %vm540, %v523
  // Predicated region
  $region22: #{tpu_custom_call.1} parent=0 // pred_check
    _
  $region23: #{tpu_custom_call.1} parent=0 // pred_check_branch
    %558 = sbr.rel (0) target = $region25
  $region24: #{tpu_custom_call.1} parent=0 // pred_region
    _
  $region25: #{tpu_custom_call.1} parent=0 // pred_fallthru
    _
  // Predicated region
  $region26: #{tpu_custom_call.1} parent=0 // pred_check
    _
  $region27: #{tpu_custom_call.1} parent=0 // pred_check_branch
    %560 = sbr.rel (0) target = $region29
  $region28: #{tpu_custom_call.1} parent=0 // pred_region
    _
  $region29: #{tpu_custom_call.1} parent=0 // pred_fallthru
    _
  // Predicated region
  $region30: #{tpu_custom_call.1} parent=0 // pred_check
    _
  $region31: #{tpu_custom_call.1} parent=0 // pred_check_branch
    %562 = sbr.rel (0) target = $region33
  $region32: #{tpu_custom_call.1} parent=0 // pred_region
    _
  $region33: #{tpu_custom_call.1} parent=0 // pred_fallthru
    _
  // Predicated region
  $region34: #{tpu_custom_call.1} parent=0 // pred_check
    _
  $region35: #{tpu_custom_call.1} parent=0 // pred_check_branch
    %564 = sbr.rel (0) target = $region37
  $region36: #{tpu_custom_call.1} parent=0 // pred_region
    _
  $region37: #{tpu_custom_call.1} parent=0 // pred_fallthru
    _
  // Predicated region
  $region38: #{tpu_custom_call.1} parent=0 // pred_check
    _
  $region39: #{tpu_custom_call.1} parent=0 // pred_check_branch
    %566 = sbr.rel (0) target = $region41
  $region40: #{tpu_custom_call.1} parent=0 // pred_region
    _
  $region41: #{tpu_custom_call.1} parent=0 // pred_fallthru
    _
  // Predicated region
  $region42: #{tpu_custom_call.1} parent=0 // pred_check
    _
  $region43: #{tpu_custom_call.1} parent=0 // pred_check_branch
    %568 = sbr.rel (0) target = $region45
  $region44: #{tpu_custom_call.1} parent=0 // pred_region
    _
  $region45: #{tpu_custom_call.1} parent=0 // pred_fallthru
    _

</llo_original>
